<compile_context>
chip_gen: v7x
topology: tpu7x:2x2x1
jax: 0.10.0
libtpu: 0.0.40
codegen_flags: <defaults>
</compile_context>

<pallas_src>
import math

import jax
import jax.numpy as jnp
from jax.experimental import pallas as pl
from jax.experimental.pallas import tpu as pltpu

STATE_DIM = 32
HIDDEN = 256
EPS = 1e-8


# ----------------------------------------------------------------------------- kernel

def _value_kernel(x_ref, w1_ref, b1_ref, w2_ref, b2_ref, w3_ref, b3_ref, out_ref):
    """One batch tile: x [TM, D] -> value [TM, 1]."""
    x = x_ref[...]                                           # f32 [TM, D] (norm folded into w1/b1)

    # fc1 + relu (MXU matmul, f32 accumulate; bias/relu on VPU in f32)
    h1 = jnp.dot(x.astype(w1_ref.dtype), w1_ref[...],
                 preferred_element_type=jnp.float32) + b1_ref[...]
    h1 = jnp.maximum(h1, 0.0)

    # fc11 + relu
    h2 = jnp.dot(h1.astype(w2_ref.dtype), w2_ref[...],
                 preferred_element_type=jnp.float32) + b2_ref[...]
    h2 = jnp.maximum(h2, 0.0)

    # q1 head (out features = 1): VPU multiply + XLU lane reduce, keeps the MXU free.
    out_ref[...] = jnp.sum(h2 * w3_ref[...], axis=-1, keepdims=True) + b3_ref[...]


# ----------------------------------------------------------------------------- wrapper

def value_forward(state, kparams, *, tm=256):
    """state: [B, state_dim] float32 -> value [B, 1] float32.

    kparams = (w1_fused, b1_fused, w2, b2, w3_row, b3) from prepare_params().
    """
    state = state.astype(jnp.float32)
    B, D = state.shape
    w1, b1, w2, b2, w3, b3 = kparams
    H = w1.shape[1]

    # Tile size: multiple of 8 sublanes; default 256 fills the MXU rows on v6e/v7x and
    # keeps per-tile intermediates (2 x TM x H f32) well under the scoped VMEM limit.
    if B < tm:
        tm_eff = max(8, ((B + 7) // 8) * 8)
    else:
        tm_eff = tm
    bp = pl.cdiv(B, tm_eff) * tm_eff
    if bp != B:
        state = jnp.pad(state, ((0, bp - B), (0, 0)))        # tail tile zero-padded, sliced off below
    grid = (bp // tm_eff,)

    wbytes = sum(int(a.size) * jnp.dtype(a.dtype).itemsize for a in (w1, b1, w2, b2, w3, b3))
    cost = pl.CostEstimate(
        flops=2 * bp * (D * H + H * H + H),
        transcendentals=0,
        bytes_accessed=bp * (D * 4 + 4) + wbytes,
    )

    pinned = lambda shape: pl.BlockSpec(shape, lambda i: (0, 0))   # VMEM-resident across the grid

    out = pl.pallas_call(
        _value_kernel,
        out_shape=jax.ShapeDtypeStruct((bp, 1), jnp.float32),
        grid=grid,
        in_specs=[
            pl.BlockSpec((tm_eff, D), lambda i: (i, 0)),     # state tile
            pinned((D, H)),                                  # fc1 weight (norm-fused, stored [in, out])
            pinned((1, H)),                                  # fc1 bias  (norm-fused)
            pinned((H, H)),                                  # fc11 weight (stored [in, out])
            pinned((1, H)),                                  # fc11 bias
            pinned((1, H)),                                  # q1 weight row
            pinned((1, 1)),                                  # q1 bias
        ],
        out_specs=pl.BlockSpec((tm_eff, 1), lambda i: (i, 0)),
        compiler_params=pltpu.CompilerParams(
            dimension_semantics=("parallel",)),              # megacore split on v7x; harmless elsewhere
        cost_estimate=cost,
    )(state, w1, b1, w2, b2, w3, b3)

    return out[:B]


# ----------------------------------------------------------------------------- params

def _orthogonal(key, shape, gain):
    """Orthogonal init (mirrors nn.init.orthogonal_) for a [out, in] matrix."""
    rows, cols = shape
    n = max(rows, cols)
    a = jax.random.normal(key, (n, n), dtype=jnp.float32)
    q, r = jnp.linalg.qr(a)
    q = q * jnp.sign(jnp.diag(r))
    return gain * q[:rows, :cols]


def make_params(key, state_dim=STATE_DIM, hidden=HIDDEN):
    """Raw (un-fused) parameters, matching the PyTorch module's init."""
    k1, k2, k3 = jax.random.split(key, 3)
    gain = math.sqrt(2.0)  # nn.init.calculate_gain('relu')

    # PyTorch Linear weights are [out, in]; store transposed [in, out] for x @ W.
    w1 = _orthogonal(k1, (hidden, state_dim), gain).T        # fc1
    w2 = _orthogonal(k2, (hidden, hidden), gain).T           # fc11
    # q1 keeps PyTorch default init: U(-1/sqrt(in), 1/sqrt(in)); stored as a [1, hidden] row.
    bound = 1.0 / math.sqrt(hidden)
    w3 = jax.random.uniform(k3, (1, hidden), jnp.float32, -bound, bound)

    b1 = jnp.zeros((1, hidden), jnp.float32)                 # nn.init.constant_(bias, 0)
    b2 = jnp.zeros((1, hidden), jnp.float32)
    b3 = jnp.zeros((1, 1), jnp.float32)

    # RunningMeanStd initial stats: mean 0, var 1.
    mean = jnp.zeros((1, state_dim), jnp.float32)
    var = jnp.ones((1, state_dim), jnp.float32)
    return (mean, var, w1, b1, w2, b2, w3, b3)


def prepare_params(raw_params, weight_dtype=jnp.float32):
    """One-time transform: fold state normalization into fc1 and cast matmul weights.

    (x - mean) * rsqrt(var + eps) @ w1 + b1  ==  x @ (scale*w1) + (b1 - (mean*scale) @ w1)
    """
    # TODO(synk): RunningMeanStd.normalize source not shown; using the standard
    # (x - mean) / sqrt(var + eps) formulation (eval mode, no stat update).
    mean, var, w1, b1, w2, b2, w3, b3 = raw_params
    scale = jax.lax.rsqrt(var + EPS)                          # (1, D)
    w1_fused = w1 * scale.reshape(-1, 1)                      # (D, H)
    b1_fused = b1 - (mean * scale) @ w1                       # (1, H)
    return (w1_fused.astype(weight_dtype), b1_fused.astype(jnp.float32),
            w2.astype(weight_dtype), b2.astype(jnp.float32),
            w3.astype(jnp.float32), b3.astype(jnp.float32))   # q1 head stays f32 (VPU path)


# ----------------------------------------------------------------------------- references

def value_ref_original(state, raw_params):
    """Pure-JAX reference with the original (un-fused, f32) formulation."""
    mean, var, w1, b1, w2, b2, w3, b3 = raw_params
    x = (state - mean) * jax.lax.rsqrt(var + EPS)
    h1 = jnp.maximum(x @ w1 + b1, 0.0)
    h2 = jnp.maximum(h1 @ w2 + b2, 0.0)
    return h2 @ w3.T + b3


def value_ref_fused(state, kparams):
    """Pure-JAX reference replicating the kernel math (incl. weight-dtype casts)."""
    w1, b1, w2, b2, w3, b3 = kparams
    h1 = jnp.maximum(jnp.dot(state.astype(w1.dtype), w1,
                             preferred_element_type=jnp.float32) + b1, 0.0)
    h2 = jnp.maximum(jnp.dot(h1.astype(w2.dtype), w2,
                             preferred_element_type=jnp.float32) + b2, 0.0)
    return jnp.sum(h2 * w3, axis=-1, keepdims=True) + b3


# ----------------------------------------------------------------------------- demo / test

if __name__ == "__main__":
    key = jax.random.PRNGKey(0)
    kp, kx1, kx2 = jax.random.split(key, 3)

    raw = make_params(kp)
    params_f32 = prepare_params(raw, jnp.float32)
    params_bf16 = prepare_params(raw, jnp.bfloat16)   # MXU-native weights for v6e/v7x

    # --- small batch (single tile, B not a multiple of 8 exercises sublane pad) ----
    state_small = jax.random.normal(kx1, (6, STATE_DIM), dtype=jnp.float32)

    v_f32 = jax.block_until_ready(value_forward(state_small, params_f32))
    ref_orig = value_ref_original(state_small, raw)
    assert v_f32.shape == (6, 1), v_f32.shape
    assert jnp.allclose(v_f32, ref_orig, atol=1e-3, rtol=1e-3), (v_f32, ref_orig)

    v_bf16 = jax.block_until_ready(value_forward(state_small, params_bf16))
    ref_bf16 = value_ref_fused(state_small, params_bf16)
    assert jnp.allclose(v_bf16, ref_bf16, atol=1e-2, rtol=1e-2), (v_bf16, ref_bf16)
    assert jnp.allclose(v_bf16, ref_orig, atol=5e-2, rtol=5e-2), (v_bf16, ref_orig)

    # --- larger batch: multi-tile grid (TM=256), non-divisible B exercises tail pad --
    state_big = jax.random.normal(kx2, (500, STATE_DIM), dtype=jnp.float32)
    v_big = jax.block_until_ready(value_forward(state_big, params_f32, tm=256))
    ref_big = value_ref_original(state_big, raw)
    assert v_big.shape == (500, 1), v_big.shape
    assert jnp.allclose(v_big, ref_big, atol=1e-3, rtol=1e-3), (v_big, ref_big)

    print("KERNEL_OK")
</pallas_src>

<mosaic_0001>
module attributes {stable_mosaic.version = 11 : i64} {
  func.func @_value_kernel(%arg0: i32, %arg1: memref<8x32xf32, #tpu.memory_space<vmem>>, %arg2: memref<32x256xf32, #tpu.memory_space<vmem>>, %arg3: memref<1x256xf32, #tpu.memory_space<vmem>>, %arg4: memref<256x256xf32, #tpu.memory_space<vmem>>, %arg5: memref<1x256xf32, #tpu.memory_space<vmem>>, %arg6: memref<1x256xf32, #tpu.memory_space<vmem>>, %arg7: memref<1x1xf32, #tpu.memory_space<vmem>>, %arg8: memref<8x1xf32, #tpu.memory_space<vmem>>) attributes {dimension_semantics = [#tpu.dimension_semantics<parallel>], iteration_bounds = array<i64: 1>, scalar_prefetch = 0 : i64, scratch_operands = 0 : i64, tpu.core_type = #tpu.core_type<tc>, window_params = [{transform_indices = @transform_0, window_bounds = array<i64: 8, 32>}, {pipeline_mode = #tpu.pipeline_mode<synchronous>, transform_indices = @transform_1, window_bounds = array<i64: 32, 256>}, {pipeline_mode = #tpu.pipeline_mode<synchronous>, transform_indices = @transform_2, window_bounds = array<i64: 1, 256>}, {pipeline_mode = #tpu.pipeline_mode<synchronous>, transform_indices = @transform_3, window_bounds = array<i64: 256, 256>}, {pipeline_mode = #tpu.pipeline_mode<synchronous>, transform_indices = @transform_4, window_bounds = array<i64: 1, 256>}, {pipeline_mode = #tpu.pipeline_mode<synchronous>, transform_indices = @transform_5, window_bounds = array<i64: 1, 256>}, {pipeline_mode = #tpu.pipeline_mode<synchronous>, transform_indices = @transform_6, window_bounds = array<i64: 1, 1>}, {transform_indices = @transform_7, window_bounds = array<i64: 8, 1>}]} {
    %c0 = arith.constant 0 : index
    %c0_0 = arith.constant 0 : index
    %0 = vector.load %arg1[%c0, %c0_0] : memref<8x32xf32, #tpu.memory_space<vmem>>, vector<8x32xf32>
    %c0_1 = arith.constant 0 : index
    %c0_2 = arith.constant 0 : index
    %1 = vector.load %arg2[%c0_1, %c0_2] : memref<32x256xf32, #tpu.memory_space<vmem>>, vector<32x256xf32>
    %cst = arith.constant dense<0.000000e+00> : vector<8x256xf32>
    %2 = tpu.matmul %0, %1, %cst {dimension_numbers = #tpu.dot_dimension_numbers<[1], [0], [0], [1], [0, 0, 1, 1], [], []>} : vector<8x32xf32>, vector<32x256xf32>, vector<8x256xf32> -> vector<8x256xf32>
    %c0_3 = arith.constant 0 : index
    %c0_4 = arith.constant 0 : index
    %3 = vector.load %arg3[%c0_3, %c0_4] : memref<1x256xf32, #tpu.memory_space<vmem>>, vector<1x256xf32>
    %4 = vector.broadcast %3 : vector<1x256xf32> to vector<8x256xf32>
    %5 = arith.addf %2, %4 : vector<8x256xf32>
    %cst_5 = arith.constant 0.000000e+00 : f32
    %6 = vector.broadcast %cst_5 : f32 to vector<8x256xf32>
    %7 = arith.maximumf %5, %6 : vector<8x256xf32>
    %c0_6 = arith.constant 0 : index
    %c0_7 = arith.constant 0 : index
    %8 = vector.load %arg4[%c0_6, %c0_7] : memref<256x256xf32, #tpu.memory_space<vmem>>, vector<256x256xf32>
    %cst_8 = arith.constant dense<0.000000e+00> : vector<8x256xf32>
    %9 = tpu.matmul %7, %8, %cst_8 {dimension_numbers = #tpu.dot_dimension_numbers<[1], [0], [0], [1], [0, 0, 1, 1], [], []>} : vector<8x256xf32>, vector<256x256xf32>, vector<8x256xf32> -> vector<8x256xf32>
    %c0_9 = arith.constant 0 : index
    %c0_10 = arith.constant 0 : index
    %10 = vector.load %arg5[%c0_9, %c0_10] : memref<1x256xf32, #tpu.memory_space<vmem>>, vector<1x256xf32>
    %11 = vector.broadcast %10 : vector<1x256xf32> to vector<8x256xf32>
    %12 = arith.addf %9, %11 : vector<8x256xf32>
    %cst_11 = arith.constant 0.000000e+00 : f32
    %13 = vector.broadcast %cst_11 : f32 to vector<8x256xf32>
    %14 = arith.maximumf %12, %13 : vector<8x256xf32>
    %c0_12 = arith.constant 0 : index
    %c0_13 = arith.constant 0 : index
    %15 = vector.load %arg6[%c0_12, %c0_13] : memref<1x256xf32, #tpu.memory_space<vmem>>, vector<1x256xf32>
    %16 = vector.broadcast %15 : vector<1x256xf32> to vector<8x256xf32>
    %17 = arith.mulf %14, %16 : vector<8x256xf32>
    %cst_14 = arith.constant dense<0.000000e+00> : vector<8xf32>
    %18 = vector.multi_reduction <add>, %17, %cst_14 [1] : vector<8x256xf32> to vector<8xf32>
    %19 = vector.shape_cast %18 : vector<8xf32> to vector<8x1xf32>
    %c0_15 = arith.constant 0 : index
    %c0_16 = arith.constant 0 : index
    %20 = vector.load %arg7[%c0_15, %c0_16] : memref<1x1xf32, #tpu.memory_space<vmem>>, vector<1x1xf32>
    %21 = vector.broadcast %20 : vector<1x1xf32> to vector<8x1xf32>
    %22 = arith.addf %19, %21 : vector<8x1xf32>
    %c0_17 = arith.constant 0 : index
    %c0_18 = arith.constant 0 : index
    %23 = vector.load %arg8[%c0_17, %c0_18] : memref<8x1xf32, #tpu.memory_space<vmem>>, vector<8x1xf32>
    tpu.vector_store %arg8[%c0_17, %c0_18], %22 {strides = array<i32>} : memref<8x1xf32, #tpu.memory_space<vmem>>, vector<8x1xf32>,
    return
  }
  func.func @transform_0(%arg0: i32) -> (i32, i32) {
    %c0_i32 = arith.constant 0 : i32
    %c0_i32_0 = arith.constant 0 : i32
    return %arg0, %c0_i32 : i32, i32
  }
  func.func @transform_1(%arg0: i32) -> (i32, i32) {
    %c0_i32 = arith.constant 0 : i32
    %c0_i32_0 = arith.constant 0 : i32
    %c0_i32_1 = arith.constant 0 : i32
    return %c0_i32, %c0_i32_0 : i32, i32
  }
  func.func @transform_2(%arg0: i32) -> (i32, i32) {
    %c0_i32 = arith.constant 0 : i32
    %c0_i32_0 = arith.constant 0 : i32
    %c0_i32_1 = arith.constant 0 : i32
    return %c0_i32, %c0_i32_0 : i32, i32
  }
  func.func @transform_3(%arg0: i32) -> (i32, i32) {
    %c0_i32 = arith.constant 0 : i32
    %c0_i32_0 = arith.constant 0 : i32
    %c0_i32_1 = arith.constant 0 : i32
    return %c0_i32, %c0_i32_0 : i32, i32
  }
  func.func @transform_4(%arg0: i32) -> (i32, i32) {
    %c0_i32 = arith.constant 0 : i32
    %c0_i32_0 = arith.constant 0 : i32
    %c0_i32_1 = arith.constant 0 : i32
    return %c0_i32, %c0_i32_0 : i32, i32
  }
  func.func @transform_5(%arg0: i32) -> (i32, i32) {
    %c0_i32 = arith.constant 0 : i32
    %c0_i32_0 = arith.constant 0 : i32
    %c0_i32_1 = arith.constant 0 : i32
    return %c0_i32, %c0_i32_0 : i32, i32
  }
  func.func @transform_6(%arg0: i32) -> (i32, i32) {
    %c0_i32 = arith.constant 0 : i32
    %c0_i32_0 = arith.constant 0 : i32
    %c0_i32_1 = arith.constant 0 : i32
    return %c0_i32, %c0_i32_0 : i32, i32
  }
  func.func @transform_7(%arg0: i32) -> (i32, i32) {
    %c0_i32 = arith.constant 0 : i32
    %c0_i32_0 = arith.constant 0 : i32
    return %arg0, %c0_i32 : i32, i32
  }
}

</mosaic_0001>

<llo_original>
// kernel: tpu_custom_call.1
$region0: #{tpu_custom_call.1}
  #allocation0 [shape = 'u32[]', space=smem, size = 0x4, offset = 0x4, fixed_abs, tag = 'smem constant byte address 0x4 - core index']
  #allocation1 [shape = 'u32[144,128]{1,0:T(1,128)}', space=vmem, size = 0x12000, scoped, tag = 'internal scratch']
  #allocation2 [shape = 'f32[1,1]{1,0:T(1,128)S(1)}', space=vmem, size = 0x200, scoped, tag = 'scoped memory for tpu_custom_call.1']
  %s0 = inlined_call_operand.hbm [shape: f32[8,32], index: 0, kind: input, shape index: {}]
  %s1 = inlined_call_operand.hbm [shape: f32[32,256], index: 1, kind: input, shape index: {}]
  %s2 = inlined_call_operand.vmem [shape: f32[1,256], index: 2, kind: input, shape index: {}]
  %s3 = inlined_call_operand.hbm [shape: f32[256,256], index: 3, kind: input, shape index: {}]
  %s4 = inlined_call_operand.vmem [shape: f32[1,256], index: 4, kind: input, shape index: {}]
  %s5 = inlined_call_operand.vmem [shape: f32[1,256], index: 5, kind: input, shape index: {}]
  %s6 = inlined_call_operand.<no memory space> [shape: f32[1,1], index: 6, kind: input, shape index: {}]
  %s7 = inlined_call_operand.vmem [shape: f32[8,1], index: 7, kind: output, shape index: {}]
  %s8 = sld [smem:[#allocation0]]
  $region50: #{tpu_custom_call.1} parent=0
    _
  %s10 = ssub.s32 1, %s8
  %s11 = scalar_select 0, %s10, %s8
  %v12 = vstv %s6
  %13 = vst [vmem:[#allocation2] sm:$0x1] %v12
  $region1: #{tpu_custom_call.1} parent=0
    #allocation3 [shape = 'u8[4096]{0}', space=vmem, size = 0x1000, scoped, tag = 'input window, operand 0, single buffered']
    #allocation4 [shape = 's32[1]{0}', space=sflag, size = 0x4, scoped, tag = 'scoped memory for tpu_custom_call.1']
    #allocation5 [shape = 'u8[32768]{0}', space=vmem, size = 0x8000, scoped, tag = 'input window, operand 1, single buffered']
    #allocation6 [shape = 's32[1]{0}', space=sflag, size = 0x4, scoped, tag = 'scoped memory for tpu_custom_call.1']
    #allocation7 [shape = 'u8[262144]{0}', space=vmem, size = 0x40000, scoped, tag = 'input window, operand 3, single buffered']
    %14 = vsyncpa [#allocation4], 0
    %15 = vsyncpa [#allocation6], 0
    // Predicated region
    $region2: #{tpu_custom_call.1} parent=1 // pred_check
      _
    $region3: #{tpu_custom_call.1} parent=1 // pred_check_branch
      %17 = sbr.rel (0) target = $region5
    $region4: #{tpu_custom_call.1} parent=1 // pred_region
      %s19 = ssub.s32 128, 128
      %20 = vsyncadd [#allocation4], %s19
      %s22 = sshll.u32 [#allocation3], 4
      %s23 = int_to_ptr.vmem [resolvable:$true] %s22
      %25 = dma.hbm_to_vmem [thread:$0]  %s0, 128, %s23, [#allocation4]
    $region5: #{tpu_custom_call.1} parent=1 // pred_fallthru
      _
    // Predicated region
    $region6: #{tpu_custom_call.1} parent=1 // pred_check
      _
    $region7: #{tpu_custom_call.1} parent=1 // pred_check_branch
      %27 = sbr.rel (0) target = $region9
    $region8: #{tpu_custom_call.1} parent=1 // pred_region
      %s29 = ssub.s32 1024, 1024
      %30 = vsyncadd [#allocation6], %s29
      %s31 = sshll.u32 [#allocation5], 4
      %s32 = int_to_ptr.vmem [resolvable:$true] %s31
      %37 = dma.hbm_to_vmem [thread:$0]  %s1, 1024, %s32, [#allocation6], 256, 256, 16
    $region9: #{tpu_custom_call.1} parent=1 // pred_fallthru
      _
    // Predicated region
    $region10: #{tpu_custom_call.1} parent=1 // pred_check
      _
    $region11: #{tpu_custom_call.1} parent=1 // pred_check_branch
      %39 = sbr.rel (0) target = $region13
    $region12: #{tpu_custom_call.1} parent=1 // pred_region
      _
    $region13: #{tpu_custom_call.1} parent=1 // pred_fallthru
      _
    // Predicated region
    $region14: #{tpu_custom_call.1} parent=1 // pred_check
      _
    $region15: #{tpu_custom_call.1} parent=1 // pred_check_branch
      %41 = sbr.rel (0) target = $region17
    $region16: #{tpu_custom_call.1} parent=1 // pred_region
      %s43 = ssub.s32 8192, 8192
      %44 = vsyncadd [#allocation6], %s43
      %s45 = sshll.u32 [#allocation7], 4
      %s46 = int_to_ptr.vmem [resolvable:$true] %s45
      %51 = dma.hbm_to_vmem [thread:$0]  %s3, 8192, %s46, [#allocation6], 256, 256, 16
    $region17: #{tpu_custom_call.1} parent=1 // pred_fallthru
      _
    // Predicated region
    $region18: #{tpu_custom_call.1} parent=1 // pred_check
      _
    $region19: #{tpu_custom_call.1} parent=1 // pred_check_branch
      %53 = sbr.rel (0) target = $region21
    $region20: #{tpu_custom_call.1} parent=1 // pred_region
      _
    $region21: #{tpu_custom_call.1} parent=1 // pred_fallthru
      _
    // Predicated region
    $region22: #{tpu_custom_call.1} parent=1 // pred_check
      _
    $region23: #{tpu_custom_call.1} parent=1 // pred_check_branch
      %55 = sbr.rel (0) target = $region25
    $region24: #{tpu_custom_call.1} parent=1 // pred_region
      _
    $region25: #{tpu_custom_call.1} parent=1 // pred_fallthru
      _
    // Predicated region
    $region26: #{tpu_custom_call.1} parent=1 // pred_check
      _
    $region27: #{tpu_custom_call.1} parent=1 // pred_check_branch
      %57 = sbr.rel (0) target = $region29
    $region28: #{tpu_custom_call.1} parent=1 // pred_region
      _
    $region29: #{tpu_custom_call.1} parent=1 // pred_fallthru
      _
    // Predicated region
    $region30: #{tpu_custom_call.1} parent=1 // pred_check
      _
    $region31: #{tpu_custom_call.1} parent=1 // pred_check_branch
      %59 = sbr.rel (0) target = $region33
    $region32: #{tpu_custom_call.1} parent=1 // pred_region
      %60 = dma.done [#allocation4], 128
    $region33: #{tpu_custom_call.1} parent=1 // pred_fallthru
      _
    // Predicated region
    $region34: #{tpu_custom_call.1} parent=1 // pred_check
      _
    $region35: #{tpu_custom_call.1} parent=1 // pred_check_branch
      %62 = sbr.rel (0) target = $region37
    $region36: #{tpu_custom_call.1} parent=1 // pred_region
      %63 = dma.done [#allocation6], 1024
    $region37: #{tpu_custom_call.1} parent=1 // pred_fallthru
      _
    // Predicated region
    $region38: #{tpu_custom_call.1} parent=1 // pred_check
      _
    $region39: #{tpu_custom_call.1} parent=1 // pred_check_branch
      %65 = sbr.rel (0) target = $region41
    $region40: #{tpu_custom_call.1} parent=1 // pred_region
      %66 = dma.done [#allocation6], 8192
    $region41: #{tpu_custom_call.1} parent=1 // pred_fallthru
      _
    %v67 = vld [vmem:[#allocation3] sm:$0xff]
    %v68 = vld [vmem:[#allocation5] sm:$0xff]
    %v69 = vld [vmem:[#allocation5 + $0x8] sm:$0xff]
    %v70 = vld [vmem:[#allocation5 + $0x10] sm:$0xff]
    %v71 = vld [vmem:[#allocation5 + $0x18] sm:$0xff]
    %v72 = vld [vmem:[#allocation5 + $0x20] sm:$0xff]
    %v73 = vld [vmem:[#allocation5 + $0x28] sm:$0xff]
    %v74 = vld [vmem:[#allocation5 + $0x30] sm:$0xff]
    %v75 = vld [vmem:[#allocation5 + $0x38] sm:$0xff]
    %v76 = vld [vmem:[%s2] sm:$0x3]
    %v78 = vlaneseq
    %v79 = vshrl.u32 %v78, 7
    %v80 = vsub.s32 0, %v79
    %v81 = vrot.slane %v76, %v80
    %v82 = vlaneseq
    %v83 = vshrl.u32 %v82, 7
    %v84 = vsub.s32 1, %v83
    %v85 = vrot.slane %v76, %v84
    %vm88 = vcmask 261120
    %v90 = vsel %vm88, %v67, 0
    %92 = vmatprep.subr.mxu0 %v69
    %93 = vmatpush1.msra.mxu0 %v68
    %94 = vmatprep.subr.mxu0 %v71
    %95 = vmatpush1.msra.mxu0 %v70
    %96 = vmatprep.subr.mxu0 %v73
    %97 = vmatpush1.msra.mxu0 %v72
    %98 = vmatprep.subr.mxu0 %v75
    %99 = vmatpush1.msra.mxu0 %v74
    %100 = vmatprep.subr.mxu0 0.0
    %101 = vmatpush1.msra.mxu0 0.0
    %102 = vmatprep.subr.mxu0 0.0
    %103 = vmatpush1.msra.mxu0 0.0
    %104 = vmatprep.subr.mxu0 0.0
    %105 = vmatpush1.msra.mxu0 0.0
    %106 = vmatprep.subr.mxu0 0.0
    %107 = vmatpush1.msra.mxu0 0.0
    %108 = vmatprep.subr.mxu0 0.0
    %109 = vmatpush1.msra.mxu0 0.0
    %110 = vmatprep.subr.mxu0 0.0
    %111 = vmatpush1.msra.mxu0 0.0
    %112 = vmatprep.subr.mxu0 0.0
    %113 = vmatpush1.msra.mxu0 0.0
    %114 = vmatprep.subr.mxu0 0.0
    %115 = vmatpush1.msra.mxu0 0.0
    %116 = vmatprep.subr.mxu0 0.0
    %117 = vmatpush1.msra.mxu0 0.0
    %118 = vmatprep.subr.mxu0 0.0
    %119 = vmatpush1.msra.mxu0 0.0
    %120 = vmatprep.subr.mxu0 0.0
    %121 = vmatpush1.msra.mxu0 0.0
    %122 = vmatprep.subr.mxu0 0.0
    %123 = vmatpush1.msra.mxu0 0.0
    %124 = vmatprep.subr.mxu0 0.0
    %125 = vmatpush1.msra.mxu0 0.0
    %126 = vmatprep.subr.mxu0 0.0
    %127 = vmatpush1.msra.mxu0 0.0
    %128 = vmatprep.subr.mxu0 0.0
    %129 = vmatpush1.msra.mxu0 0.0
    %130 = vmatprep.subr.mxu0 0.0
    %131 = vmatpush1.msra.mxu0 0.0
    %132 = vmatprep.subr.mxu0 0.0
    %133 = vmatpush1.msra.mxu0 0.0
    %134 = vmatprep.subr.mxu0 0.0
    %135 = vmatpush1.msra.mxu0 0.0
    %136 = vmatprep.subr.mxu0 0.0
    %137 = vmatpush1.msra.mxu0 0.0
    %138 = vmatprep.subr.mxu0 0.0
    %139 = vmatpush1.msra.mxu0 0.0
    %140 = vmatprep.subr.mxu0 0.0
    %141 = vmatpush1.msra.mxu0 0.0
    %142 = vmatprep.subr.mxu0 0.0
    %143 = vmatpush1.msra.mxu0 0.0
    %144 = vmatprep.subr.mxu0 0.0
    %145 = vmatpush1.msra.mxu0 0.0
    %146 = vmatprep.subr.mxu0 0.0
    %147 = vmatpush1.msra.mxu0 0.0
    %148 = vmatprep.subr.mxu0 0.0
    %149 = vmatpush1.msra.mxu0 0.0
    %150 = vmatprep.subr.mxu0 0.0
    %151 = vmatpush1.msra.mxu0 0.0
    %152 = vmatprep.subr.mxu0 0.0
    %153 = vmatpush1.msra.mxu0 0.0
    %154 = vmatprep.subr.mxu0 0.0
    %155 = vmatpush1.msra.mxu0 0.0
    %156 = vmatprep.mubr.f32.mxu0 0.0
    %157 = vmatmul.mubr.f32.gmra.mrb[0].mxu0 %v90
    %v158 = vpop.f32.mrb[0].mxu0
    %v159 = vadd.f32 %v81, %v158
    %v160 = vpop.f32.mrb[0].mxu0
    %v161 = vadd.f32 %v85, %v160
    %162 = vdwg.mxu0
    %v163 = vmax.f32 %v159, 0.0
    %v164 = vmax.f32 %v161, 0.0
    %v165 = vld [vmem:[#allocation7] sm:$0xff]
    %v166 = vld [vmem:[#allocation7 + $0x8] sm:$0xff]
    %v167 = vld [vmem:[#allocation7 + $0x10] sm:$0xff]
    %v168 = vld [vmem:[#allocation7 + $0x18] sm:$0xff]
    %v169 = vld [vmem:[#allocation7 + $0x20] sm:$0xff]
    %v170 = vld [vmem:[#allocation7 + $0x28] sm:$0xff]
    %v171 = vld [vmem:[#allocation7 + $0x30] sm:$0xff]
    %v172 = vld [vmem:[#allocation7 + $0x38] sm:$0xff]
    %v173 = vld [vmem:[#allocation7 + $0x40] sm:$0xff]
    %v174 = vld [vmem:[#allocation7 + $0x48] sm:$0xff]
    %v175 = vld [vmem:[#allocation7 + $0x50] sm:$0xff]
    %v176 = vld [vmem:[#allocation7 + $0x58] sm:$0xff]
    %v177 = vld [vmem:[#allocation7 + $0x60] sm:$0xff]
    %v178 = vld [vmem:[#allocation7 + $0x68] sm:$0xff]
    %v179 = vld [vmem:[#allocation7 + $0x70] sm:$0xff]
    %v180 = vld [vmem:[#allocation7 + $0x78] sm:$0xff]
    %v181 = vld [vmem:[#allocation7 + $0x80] sm:$0xff]
    %v182 = vld [vmem:[#allocation7 + $0x88] sm:$0xff]
    %v183 = vld [vmem:[#allocation7 + $0x90] sm:$0xff]
    %v184 = vld [vmem:[#allocation7 + $0x98] sm:$0xff]
    %v185 = vld [vmem:[#allocation7 + $0xa0] sm:$0xff]
    %v186 = vld [vmem:[#allocation7 + $0xa8] sm:$0xff]
    %v187 = vld [vmem:[#allocation7 + $0xb0] sm:$0xff]
    %v188 = vld [vmem:[#allocation7 + $0xb8] sm:$0xff]
    %v189 = vld [vmem:[#allocation7 + $0xc0] sm:$0xff]
    %v190 = vld [vmem:[#allocation7 + $0xc8] sm:$0xff]
    %v191 = vld [vmem:[#allocation7 + $0xd0] sm:$0xff]
    %v192 = vld [vmem:[#allocation7 + $0xd8] sm:$0xff]
    %v193 = vld [vmem:[#allocation7 + $0xe0] sm:$0xff]
    %v194 = vld [vmem:[#allocation7 + $0xe8] sm:$0xff]
    %v195 = vld [vmem:[#allocation7 + $0xf0] sm:$0xff]
    %v196 = vld [vmem:[#allocation7 + $0xf8] sm:$0xff]
    %v197 = vld [vmem:[#allocation7 + $0x100] sm:$0xff]
    %v198 = vld [vmem:[#allocation7 + $0x108] sm:$0xff]
    %v199 = vld [vmem:[#allocation7 + $0x110] sm:$0xff]
    %v200 = vld [vmem:[#allocation7 + $0x118] sm:$0xff]
    %v201 = vld [vmem:[#allocation7 + $0x120] sm:$0xff]
    %v202 = vld [vmem:[#allocation7 + $0x128] sm:$0xff]
    %v203 = vld [vmem:[#allocation7 + $0x130] sm:$0xff]
    %v204 = vld [vmem:[#allocation7 + $0x138] sm:$0xff]
    %v205 = vld [vmem:[#allocation7 + $0x140] sm:$0xff]
    %v206 = vld [vmem:[#allocation7 + $0x148] sm:$0xff]
    %v207 = vld [vmem:[#allocation7 + $0x150] sm:$0xff]
    %v208 = vld [vmem:[#allocation7 + $0x158] sm:$0xff]
    %v209 = vld [vmem:[#allocation7 + $0x160] sm:$0xff]
    %v210 = vld [vmem:[#allocation7 + $0x168] sm:$0xff]
    %v211 = vld [vmem:[#allocation7 + $0x170] sm:$0xff]
    %v212 = vld [vmem:[#allocation7 + $0x178] sm:$0xff]
    %v213 = vld [vmem:[#allocation7 + $0x180] sm:$0xff]
    %v214 = vld [vmem:[#allocation7 + $0x188] sm:$0xff]
    %v215 = vld [vmem:[#allocation7 + $0x190] sm:$0xff]
    %v216 = vld [vmem:[#allocation7 + $0x198] sm:$0xff]
    %v217 = vld [vmem:[#allocation7 + $0x1a0] sm:$0xff]
    %v218 = vld [vmem:[#allocation7 + $0x1a8] sm:$0xff]
    %v219 = vld [vmem:[#allocation7 + $0x1b0] sm:$0xff]
    %v220 = vld [vmem:[#allocation7 + $0x1b8] sm:$0xff]
    %v221 = vld [vmem:[#allocation7 + $0x1c0] sm:$0xff]
    %v222 = vld [vmem:[#allocation7 + $0x1c8] sm:$0xff]
    %v223 = vld [vmem:[#allocation7 + $0x1d0] sm:$0xff]
    %v224 = vld [vmem:[#allocation7 + $0x1d8] sm:$0xff]
    %v225 = vld [vmem:[#allocation7 + $0x1e0] sm:$0xff]
    %v226 = vld [vmem:[#allocation7 + $0x1e8] sm:$0xff]
    %v227 = vld [vmem:[#allocation7 + $0x1f0] sm:$0xff]
    %v228 = vld [vmem:[#allocation7 + $0x1f8] sm:$0xff]
    %v229 = vld [vmem:[%s4] sm:$0x3]
    %v231 = vlaneseq
    %v232 = vshrl.u32 %v231, 7
    %v233 = vsub.s32 0, %v232
    %v234 = vrot.slane %v229, %v233
    %v235 = vlaneseq
    %v236 = vshrl.u32 %v235, 7
    %v237 = vsub.s32 1, %v236
    %v238 = vrot.slane %v229, %v237
    %241 = vmatprep.subr.mxu0 %v166
    %242 = vmatpush1.msra.mxu0 %v165
    %243 = vmatprep.subr.mxu0 %v168
    %244 = vmatpush1.msra.mxu0 %v167
    %245 = vmatprep.subr.mxu0 %v170
    %246 = vmatpush1.msra.mxu0 %v169
    %247 = vmatprep.subr.mxu0 %v172
    %248 = vmatpush1.msra.mxu0 %v171
    %249 = vmatprep.subr.mxu0 %v174
    %250 = vmatpush1.msra.mxu0 %v173
    %251 = vmatprep.subr.mxu0 %v176
    %252 = vmatpush1.msra.mxu0 %v175
    %253 = vmatprep.subr.mxu0 %v178
    %254 = vmatpush1.msra.mxu0 %v177
    %255 = vmatprep.subr.mxu0 %v180
    %256 = vmatpush1.msra.mxu0 %v179
    %257 = vmatprep.subr.mxu0 %v182
    %258 = vmatpush1.msra.mxu0 %v181
    %259 = vmatprep.subr.mxu0 %v184
    %260 = vmatpush1.msra.mxu0 %v183
    %261 = vmatprep.subr.mxu0 %v186
    %262 = vmatpush1.msra.mxu0 %v185
    %263 = vmatprep.subr.mxu0 %v188
    %264 = vmatpush1.msra.mxu0 %v187
    %265 = vmatprep.subr.mxu0 %v190
    %266 = vmatpush1.msra.mxu0 %v189
    %267 = vmatprep.subr.mxu0 %v192
    %268 = vmatpush1.msra.mxu0 %v191
    %269 = vmatprep.subr.mxu0 %v194
    %270 = vmatpush1.msra.mxu0 %v193
    %271 = vmatprep.subr.mxu0 %v196
    %272 = vmatpush1.msra.mxu0 %v195
    %273 = vmatprep.subr.mxu0 %v198
    %274 = vmatpush1.msra.mxu0 %v197
    %275 = vmatprep.subr.mxu0 %v200
    %276 = vmatpush1.msra.mxu0 %v199
    %277 = vmatprep.subr.mxu0 %v202
    %278 = vmatpush1.msra.mxu0 %v201
    %279 = vmatprep.subr.mxu0 %v204
    %280 = vmatpush1.msra.mxu0 %v203
    %281 = vmatprep.subr.mxu0 %v206
    %282 = vmatpush1.msra.mxu0 %v205
    %283 = vmatprep.subr.mxu0 %v208
    %284 = vmatpush1.msra.mxu0 %v207
    %285 = vmatprep.subr.mxu0 %v210
    %286 = vmatpush1.msra.mxu0 %v209
    %287 = vmatprep.subr.mxu0 %v212
    %288 = vmatpush1.msra.mxu0 %v211
    %289 = vmatprep.subr.mxu0 %v214
    %290 = vmatpush1.msra.mxu0 %v213
    %291 = vmatprep.subr.mxu0 %v216
    %292 = vmatpush1.msra.mxu0 %v215
    %293 = vmatprep.subr.mxu0 %v218
    %294 = vmatpush1.msra.mxu0 %v217
    %295 = vmatprep.subr.mxu0 %v220
    %296 = vmatpush1.msra.mxu0 %v219
    %297 = vmatprep.subr.mxu0 %v222
    %298 = vmatpush1.msra.mxu0 %v221
    %299 = vmatprep.subr.mxu0 %v224
    %300 = vmatpush1.msra.mxu0 %v223
    %301 = vmatprep.subr.mxu0 %v226
    %302 = vmatpush1.msra.mxu0 %v225
    %303 = vmatprep.subr.mxu0 %v228
    %304 = vmatpush1.msra.mxu0 %v227
    %305 = vmatprep.mubr.f32.mxu0 %v164
    %306 = vmatmul.mubr.f32.gmra.mrb[0].mxu0 %v163
    %v307 = vpop.f32.mrb[0].mxu0
    %v308 = vadd.f32 %v234, %v307
    %v309 = vpop.f32.mrb[0].mxu0
    %v310 = vadd.f32 %v238, %v309
    %311 = vdwg.mxu0
    %v312 = vmax.f32 %v308, 0.0
    %v313 = vmax.f32 %v310, 0.0
    %v314 = vld [vmem:[%s5] sm:$0x3]
    %v316 = vlaneseq
    %v317 = vshrl.u32 %v316, 7
    %v318 = vsub.s32 0, %v317
    %v319 = vrot.slane %v314, %v318
    %v320 = vlaneseq
    %v321 = vshrl.u32 %v320, 7
    %v322 = vsub.s32 1, %v321
    %v323 = vrot.slane %v314, %v322
    %v326 = vmul.f32 %v312, %v319
    %v327 = vmul.f32 %v313, %v323
    %v328 = vadd.f32 %v326, %v327
    %329 = vadd.xlane.f32.xlu0 %v328
    %v330 = vpop.xlane.xlu0 %329
    %v331 = vld [vmem:[#allocation2] sm:$0x1]
    %v333 = vlaneseq
    %v334 = vshrl.u32 %v333, 7
    %v335 = vsub.s32 0, %v334
    %v336 = vrot.slane %v331, %v335
    %v338 = vadd.f32 %v330, %v336
    %vm339 = vcmask 7168
    %340 = vst.msk [vmem:[%s7] sm:$0xff] %vm339, %v338
    // Predicated region
    $region42: #{tpu_custom_call.1} parent=1 // pred_check
      _
    $region43: #{tpu_custom_call.1} parent=1 // pred_check_branch
      %342 = sbr.rel (0) target = $region45
    $region44: #{tpu_custom_call.1} parent=1 // pred_region
      _
    $region45: #{tpu_custom_call.1} parent=1 // pred_fallthru
      _
    // Predicated region
    $region46: #{tpu_custom_call.1} parent=1 // pred_check
      _
    $region47: #{tpu_custom_call.1} parent=1 // pred_check_branch
      %344 = sbr.rel (0) target = $region49
    $region48: #{tpu_custom_call.1} parent=1 // pred_region
      _
    $region49: #{tpu_custom_call.1} parent=1 // pred_fallthru
      _
    %345 = vsyncpa [#allocation4], 1
    %346 = vsyncpa [#allocation6], 1

</llo_original>
